<compile_context>
chip_gen: v5e
topology: v5e:2x2
jax: 0.10.0
libtpu: 0.0.40
codegen_flags: <defaults>
</compile_context>

<pallas_src>
import functools

import jax
import jax.numpy as jnp
from jax.experimental import pallas as pl
from jax.experimental.pallas import tpu as pltpu


def _mlp_kernel(x_ref, p_ref, o_ref, *, in0, n, out, act_dtype):
    # x_ref: (in0, TB) lane-dense; p_ref: (n, in0 + 3 + 2n) packed params; o_ref: (out, TB)
    x = x_ref[...]

    w0 = p_ref[:, 0:in0]                                  # (n, in0)
    b0 = p_ref[:, in0:in0 + 1]                            # (n, 1)
    w1 = p_ref[:, in0 + 1:in0 + 1 + n]                    # (n, n)
    b1 = p_ref[:, in0 + 1 + n:in0 + 2 + n]                # (n, 1)
    w2 = p_ref[0:out, in0 + 2 + n:in0 + 2 + 2 * n]        # (out, n)
    b2 = p_ref[0:out, in0 + 2 + 2 * n:in0 + 3 + 2 * n]    # (out, 1)

    # Layer 0: Linear(in0 -> n) + tanh   (dropout = identity, eval mode)
    h0 = jnp.dot(w0, x, preferred_element_type=jnp.float32) + b0
    h0 = jnp.tanh(h0.astype(act_dtype))

    # Layer 1: Linear(n -> n) + tanh     (dropout = identity, eval mode)
    h1 = jnp.dot(w1.astype(act_dtype), h0, preferred_element_type=jnp.float32) + b1
    h1 = jnp.tanh(h1.astype(act_dtype))

    # Layer 2: Linear(n -> out)
    o = jnp.dot(w2.astype(act_dtype), h1, preferred_element_type=jnp.float32) + b2
    o_ref[...] = o.astype(o_ref.dtype)


def _pack_params(params):
    """Pack w0,b0,w1,b1,w2,b2 into a single (n, in0+3+2n) f32 slab (PyTorch (out,in) layout)."""
    w0, b0 = params["w0"], params["b0"]
    w1, b1 = params["w1"], params["b1"]
    w2, b2 = params["w2"], params["b2"]
    n, in0 = w0.shape
    out = w2.shape[0]
    w2p = jnp.zeros((n, n), jnp.float32).at[:out, :].set(w2.astype(jnp.float32))
    b2p = jnp.zeros((n, 1), jnp.float32).at[:out, :].set(b2.astype(jnp.float32))
    slab = jnp.concatenate(
        [jnp.asarray(w0, jnp.float32), jnp.asarray(b0, jnp.float32),
         jnp.asarray(w1, jnp.float32), jnp.asarray(b1, jnp.float32),
         w2p, b2p], axis=1)
    return slab, in0, n, out


def _choose_tile(batch, tile_batch):
    if batch < 128:
        # Lane dim equals the full array dim (allowed by the (8,128) rule); single block.
        return batch
    tile_rounded = max(128, (int(tile_batch) // 128) * 128)   # force multiple of 128
    rounded = ((batch + 127) // 128) * 128
    # Keep >= 2 grid steps when the batch allows it so v7x's second TensorCore gets
    # work via the "parallel" grid axis (no effect on single-TC v5e/v6e).
    half = (((rounded + 1) // 2 + 127) // 128) * 128
    return max(128, min(tile_rounded, half, rounded))


def _auto_act_dtype():
    # bf16 tanh only helps (and only lowers natively) on v6e / v7x; keep f32 elsewhere (v5e).
    try:
        kind = jax.devices()[0].device_kind.lower()
    except Exception:
        return jnp.float32
    if "v6" in kind or "v7" in kind or "tpu7" in kind:
        return jnp.bfloat16
    return jnp.float32


def _forward_slab(x_fm, params, *, tile_batch, act_dtype):
    """x_fm: (in_features, batch) feature-major slab -> (out_features, batch) slab."""
    slab, in0, n, out = _pack_params(params)
    x_fm = jnp.asarray(x_fm, jnp.float32)
    batch = x_fm.shape[1]

    if act_dtype is None:
        act_dtype = _auto_act_dtype()

    tb = _choose_tile(batch, tile_batch)
    grid = (pl.cdiv(batch, tb),)

    kernel = functools.partial(_mlp_kernel, in0=in0, n=n, out=out, act_dtype=act_dtype)

    # Roofline hint for the outer XLA scheduler (kernel is EUP / HBM bound, not MXU bound).
    cost = pl.CostEstimate(
        flops=2 * (in0 * n + n * n + n * out) * batch,
        transcendentals=2 * n * batch,
        bytes_accessed=4 * (in0 + out) * batch + 4 * int(slab.size),
    )

    return pl.pallas_call(
        kernel,
        out_shape=jax.ShapeDtypeStruct((out, batch), jnp.float32),
        grid_spec=pltpu.PrefetchScalarGridSpec(
            num_scalar_prefetch=0,
            grid=grid,
            in_specs=[
                pl.BlockSpec((in0, tb), lambda i: (0, i)),     # x tile: lane-dense
                pl.BlockSpec(slab.shape, lambda i: (0, 0)),    # packed params, VMEM-resident
            ],
            out_specs=pl.BlockSpec((out, tb), lambda i: (0, i)),
        ),
        compiler_params=pltpu.CompilerParams(
            dimension_semantics=("parallel",),
            vmem_limit_bytes=48 * 1024 * 1024,
        ),
        cost_estimate=cost,
    )(x_fm, slab)


def classificador_final_forward(x, params, *, tile_batch=32768, act_dtype=None):
    """PyTorch-equivalent entry point: x (batch, 4) -> (batch, 3).

    The x.T / out.T passes are the price of the (batch, features) contract; use
    classificador_final_forward_fm to avoid them entirely.
    """
    out_fm = _forward_slab(x.T, params, tile_batch=tile_batch, act_dtype=act_dtype)
    return out_fm.T


def classificador_final_forward_fm(x_fm, params, *, tile_batch=32768, act_dtype=None):
    """Feature-major entry point with zero wrapper layout passes: (4, batch) -> (3, batch)."""
    return _forward_slab(x_fm, params, tile_batch=tile_batch, act_dtype=act_dtype)


def init_params(key, neurons=16):
    """Deterministic init mirroring the PyTorch module (PyTorch (out,in) layout).

    dense0.weight, dense1.weight: torch.nn.init.uniform_ -> U[0, 1)
    dense2.weight and all biases: PyTorch default U[-1/sqrt(fan_in), 1/sqrt(fan_in)]
    """
    k0, k1, k2, kb0, kb1, kb2 = jax.random.split(key, 6)
    in0, in1, in2, out2 = 4, neurons, neurons, 3

    w0 = jax.random.uniform(k0, (neurons, in0), jnp.float32, 0.0, 1.0)
    w1 = jax.random.uniform(k1, (neurons, in1), jnp.float32, 0.0, 1.0)

    bound2 = 1.0 / jnp.sqrt(jnp.float32(in2))
    w2 = jax.random.uniform(k2, (out2, in2), jnp.float32, -bound2, bound2)

    bound0 = 1.0 / jnp.sqrt(jnp.float32(in0))
    bound1 = 1.0 / jnp.sqrt(jnp.float32(in1))
    b0 = jax.random.uniform(kb0, (neurons, 1), jnp.float32, -bound0, bound0)
    b1 = jax.random.uniform(kb1, (neurons, 1), jnp.float32, -bound1, bound1)
    b2 = jax.random.uniform(kb2, (out2, 1), jnp.float32, -bound2, bound2)

    return {"w0": w0, "b0": b0, "w1": w1, "b1": b1, "w2": w2, "b2": b2}


def reference_forward(x, p):
    h0 = jnp.tanh(x @ p["w0"].T + p["b0"][:, 0])
    h1 = jnp.tanh(h0 @ p["w1"].T + p["b1"][:, 0])
    return h1 @ p["w2"].T + p["b2"][:, 0]


if __name__ == "__main__":
    key = jax.random.PRNGKey(0)
    kx, kx2, kp = jax.random.split(key, 3)

    params = init_params(kp, neurons=16)

    # 1) Tiny batch (single block), f32 activations -> tight check vs reference.
    batch = 8
    x = jax.random.normal(kx, (batch, 4), dtype=jnp.float32)
    out = jax.block_until_ready(
        classificador_final_forward(x, params, act_dtype=jnp.float32))
    ref = reference_forward(x, params)
    assert out.shape == (batch, 3), out.shape
    assert jnp.allclose(out, ref, atol=1e-5, rtol=1e-5), "mismatch (single block, f32)"

    # 2) Multiple grid steps + ragged boundary block, f32 activations -> tight check.
    batch2 = 300
    x2 = jax.random.normal(kx2, (batch2, 4), dtype=jnp.float32)
    out2 = jax.block_until_ready(
        classificador_final_forward(x2, params, tile_batch=128, act_dtype=jnp.float32))
    ref2 = reference_forward(x2, params)
    assert out2.shape == (batch2, 3), out2.shape
    assert jnp.allclose(out2, ref2, atol=1e-5, rtol=1e-5), "mismatch (multi block, f32)"

    # 3) Default fast path (bf16 tanh on v6e/v7x, f32 on v5e) via the feature-major
    #    entry point (no wrapper layout passes) -> loose sanity check.
    out3 = jax.block_until_ready(classificador_final_forward_fm(x2.T, params))
    assert out3.shape == (3, batch2), out3.shape
    assert bool(jnp.all(jnp.isfinite(out3))), "non-finite output (fast path)"
    assert jnp.allclose(out3, ref2.T, atol=1e-1, rtol=1e-1), "mismatch (fast path)"

    print("KERNEL_OK")
</pallas_src>

<mosaic_0001>
module attributes {stable_mosaic.version = 11 : i64} {
  func.func @_mlp_kernel(%arg0: i32, %arg1: memref<4x8xf32, #tpu.memory_space<vmem>>, %arg2: memref<16x39xf32, #tpu.memory_space<vmem>>, %arg3: memref<3x8xf32, #tpu.memory_space<vmem>>) attributes {dimension_semantics = [#tpu.dimension_semantics<parallel>], iteration_bounds = array<i64: 1>, scalar_prefetch = 0 : i64, scratch_operands = 0 : i64, tpu.core_type = #tpu.core_type<tc>, window_params = [{transform_indices = @transform_0, window_bounds = array<i64: 4, 8>}, {pipeline_mode = #tpu.pipeline_mode<synchronous>, transform_indices = @transform_1, window_bounds = array<i64: 16, 39>}, {transform_indices = @transform_2, window_bounds = array<i64: 3, 8>}]} {
    %c0 = arith.constant 0 : index
    %c0_0 = arith.constant 0 : index
    %0 = vector.load %arg1[%c0, %c0_0] : memref<4x8xf32, #tpu.memory_space<vmem>>, vector<4x8xf32>
    %c0_1 = arith.constant 0 : index
    %c0_2 = arith.constant 0 : index
    %1 = vector.load %arg2[%c0_1, %c0_2] : memref<16x39xf32, #tpu.memory_space<vmem>>, vector<16x4xf32>
    %c0_3 = arith.constant 0 : index
    %c4 = arith.constant 4 : index
    %2 = vector.load %arg2[%c0_3, %c4] : memref<16x39xf32, #tpu.memory_space<vmem>>, vector<16x1xf32>
    %c0_4 = arith.constant 0 : index
    %c5 = arith.constant 5 : index
    %3 = vector.load %arg2[%c0_4, %c5] : memref<16x39xf32, #tpu.memory_space<vmem>>, vector<16x16xf32>
    %c0_5 = arith.constant 0 : index
    %c21 = arith.constant 21 : index
    %4 = vector.load %arg2[%c0_5, %c21] : memref<16x39xf32, #tpu.memory_space<vmem>>, vector<16x1xf32>
    %c0_6 = arith.constant 0 : index
    %c22 = arith.constant 22 : index
    %5 = vector.load %arg2[%c0_6, %c22] : memref<16x39xf32, #tpu.memory_space<vmem>>, vector<3x16xf32>
    %c0_7 = arith.constant 0 : index
    %c38 = arith.constant 38 : index
    %6 = vector.load %arg2[%c0_7, %c38] : memref<16x39xf32, #tpu.memory_space<vmem>>, vector<3x1xf32>
    %cst = arith.constant dense<0.000000e+00> : vector<16x8xf32>
    %7 = tpu.matmul %1, %0, %cst {dimension_numbers = #tpu.dot_dimension_numbers<[1], [0], [0], [1], [0, 0, 1, 1], [], []>} : vector<16x4xf32>, vector<4x8xf32>, vector<16x8xf32> -> vector<16x8xf32>
    %8 = vector.broadcast %2 : vector<16x1xf32> to vector<16x8xf32>
    %9 = arith.addf %7, %8 : vector<16x8xf32>
    %10 = math.tanh %9 : vector<16x8xf32>
    %cst_8 = arith.constant dense<0.000000e+00> : vector<16x8xf32>
    %11 = tpu.matmul %3, %10, %cst_8 {dimension_numbers = #tpu.dot_dimension_numbers<[1], [0], [0], [1], [0, 0, 1, 1], [], []>} : vector<16x16xf32>, vector<16x8xf32>, vector<16x8xf32> -> vector<16x8xf32>
    %12 = vector.broadcast %4 : vector<16x1xf32> to vector<16x8xf32>
    %13 = arith.addf %11, %12 : vector<16x8xf32>
    %14 = math.tanh %13 : vector<16x8xf32>
    %cst_9 = arith.constant dense<0.000000e+00> : vector<3x8xf32>
    %15 = tpu.matmul %5, %14, %cst_9 {dimension_numbers = #tpu.dot_dimension_numbers<[1], [0], [0], [1], [0, 0, 1, 1], [], []>} : vector<3x16xf32>, vector<16x8xf32>, vector<3x8xf32> -> vector<3x8xf32>
    %16 = vector.broadcast %6 : vector<3x1xf32> to vector<3x8xf32>
    %17 = arith.addf %15, %16 : vector<3x8xf32>
    %c0_10 = arith.constant 0 : index
    %c0_11 = arith.constant 0 : index
    %18 = vector.load %arg3[%c0_10, %c0_11] : memref<3x8xf32, #tpu.memory_space<vmem>>, vector<3x8xf32>
    tpu.vector_store %arg3[%c0_10, %c0_11], %17 {strides = array<i32>} : memref<3x8xf32, #tpu.memory_space<vmem>>, vector<3x8xf32>,
    return
  }
  func.func @transform_0(%arg0: i32) -> (i32, i32) {
    %c0_i32 = arith.constant 0 : i32
    %c0_i32_0 = arith.constant 0 : i32
    return %c0_i32, %arg0 : i32, i32
  }
  func.func @transform_1(%arg0: i32) -> (i32, i32) {
    %c0_i32 = arith.constant 0 : i32
    %c0_i32_0 = arith.constant 0 : i32
    %c0_i32_1 = arith.constant 0 : i32
    return %c0_i32, %c0_i32_0 : i32, i32
  }
  func.func @transform_2(%arg0: i32) -> (i32, i32) {
    %c0_i32 = arith.constant 0 : i32
    %c0_i32_0 = arith.constant 0 : i32
    return %c0_i32, %arg0 : i32, i32
  }
}

</mosaic_0001>

<llo_original>
// kernel: tpu_custom_call.1
$region0: #{tpu_custom_call.1}
  #allocation0 [shape = 'u32[]', space=smem, size = 0x4, offset = 0x4, fixed_abs, tag = 'smem constant byte address 0x4 - core index']
  #allocation1 [shape = 'u32[72,128]{1,0:T(1,128)}', space=vmem, size = 0x9000, scoped, tag = 'internal scratch']
  %s0 = inlined_call_operand.hbm [shape: f32[4,8], index: 0, kind: input, shape index: {}]
  %s1 = inlined_call_operand.hbm [shape: f32[16,39], index: 1, kind: input, shape index: {}]
  %s2 = inlined_call_operand.hbm [shape: f32[3,8], index: 2, kind: output, shape index: {}]
  %s3 = sld [smem:[#allocation0]]
  $region26: #{tpu_custom_call.1} parent=0
    _
  %s5 = ssub.s32 1, %s3
  %s6 = scalar_select 0, %s5, %s3
  $region1: #{tpu_custom_call.1} parent=0
    #allocation2 [shape = 'u8[2048]{0}', space=vmem, size = 0x800, scoped, tag = 'input window, operand 0, single buffered']
    #allocation3 [shape = 's32[1]{0}', space=sflag, size = 0x4, scoped, tag = 'scoped memory for tpu_custom_call.1']
    #allocation4 [shape = 's32[1]{0}', space=sflag, size = 0x4, scoped, tag = 'scoped memory for tpu_custom_call.1']
    #allocation5 [shape = 'u8[8192]{0}', space=vmem, size = 0x2000, scoped, tag = 'input window, operand 1, single buffered']
    #allocation6 [shape = 's32[1]{0}', space=sflag, size = 0x4, scoped, tag = 'scoped memory for tpu_custom_call.1']
    #allocation7 [shape = 'u8[2048]{0}', space=vmem, size = 0x800, scoped, tag = 'output window, operand 0, single buffered']
    %7 = vsyncpa [#allocation3], 0
    %8 = vsyncpa [#allocation6], 0
    %9 = vsyncpa [#allocation4], 0
    // Predicated region
    $region2: #{tpu_custom_call.1} parent=1 // pred_check
      _
    $region3: #{tpu_custom_call.1} parent=1 // pred_check_branch
      %11 = sbr.rel (0) target = $region5
    $region4: #{tpu_custom_call.1} parent=1 // pred_region
      %13 = vsyncadd [#allocation3], 0
      %s15 = sshll.u32 %s0, 4
      %s16 = int_to_ptr.hbm [resolvable:$true] %s15
      %s17 = sshll.u32 [#allocation2], 4
      %s18 = int_to_ptr.vmem [resolvable:$true] %s17
      %20 = dma.hbm_to_vmem [thread:$0]  %s16, 64, %s18, [#allocation3]
    $region5: #{tpu_custom_call.1} parent=1 // pred_fallthru
      _
    // Predicated region
    $region6: #{tpu_custom_call.1} parent=1 // pred_check
      _
    $region7: #{tpu_custom_call.1} parent=1 // pred_check_branch
      %22 = sbr.rel (0) target = $region9
    $region8: #{tpu_custom_call.1} parent=1 // pred_region
      %24 = vsyncadd [#allocation6], 0
      %s25 = sshll.u32 %s1, 4
      %s26 = int_to_ptr.hbm [resolvable:$true] %s25
      %s27 = sshll.u32 [#allocation5], 4
      %s28 = int_to_ptr.vmem [resolvable:$true] %s27
      %33 = dma.hbm_to_vmem [thread:$0]  %s26, 256, %s28, [#allocation6], 128, 128, 8
    $region9: #{tpu_custom_call.1} parent=1 // pred_fallthru
      _
    // Predicated region
    $region10: #{tpu_custom_call.1} parent=1 // pred_check
      _
    $region11: #{tpu_custom_call.1} parent=1 // pred_check_branch
      %35 = sbr.rel (0) target = $region13
    $region12: #{tpu_custom_call.1} parent=1 // pred_region
      %37 = dma.done [#allocation3], 64
    $region13: #{tpu_custom_call.1} parent=1 // pred_fallthru
      _
    // Predicated region
    $region14: #{tpu_custom_call.1} parent=1 // pred_check
      _
    $region15: #{tpu_custom_call.1} parent=1 // pred_check_branch
      %39 = sbr.rel (0) target = $region17
    $region16: #{tpu_custom_call.1} parent=1 // pred_region
      %41 = dma.done [#allocation6], 256
    $region17: #{tpu_custom_call.1} parent=1 // pred_fallthru
      _
    %v42 = vld [vmem:[#allocation2] sm:$0xf]
    %v43 = vld [vmem:[#allocation5] sm:$0xff]
    %v44 = vld [vmem:[#allocation5 + $0x8] sm:$0xff]
    %v45 = vld [vmem:[#allocation5] sm:$0x7]
    %47 = vset.pattern.permute.xlu0 4
    %48 = vperm.xlu0 %47, %v43
    %v49 = vpop.permute.xlu0 %48
    %52 = vset.pattern.permute.xlu0 4
    %53 = vperm.xlu0 %52, %v44
    %v54 = vpop.permute.xlu0 %53
    %vm56 = vcmask 31744
    %v57 = vsel %vm56, %v43, 0
    %v59 = vsel %vm56, %v44, 0
    %vm61 = vcmask 1043456
    %v63 = vsel %vm61, %v42, 0
    %65 = vmatpush.msra.mxu0 0.0
    %66 = vmatpush.msra.mxu0 0.0
    %67 = vmatpush.msra.mxu0 0.0
    %68 = vmatpush.msra.mxu0 0.0
    %69 = vmatpush.msra.mxu0 0.0
    %70 = vmatpush.msra.mxu0 0.0
    %71 = vmatpush.msra.mxu0 0.0
    %72 = vmatpush.msra.mxu0 0.0
    %73 = vmatpush.msra.mxu0 0.0
    %74 = vmatpush.msra.mxu0 0.0
    %75 = vmatpush.msra.mxu0 0.0
    %76 = vmatpush.msra.mxu0 0.0
    %77 = vmatpush.msra.mxu0 0.0
    %78 = vmatpush.msra.mxu0 0.0
    %79 = vmatpush.msra.mxu0 0.0
    %80 = vmatpush.msra.mxu0 %v63
    %81 = vmatmul.f32.gmra.mxu0 %v57
    %v82 = vpop.f32.mrf.mxu0
    %v83 = vadd.f32 %v49, %v82
    %84 = vmatmul.f32.gmra.mxu0 %v59
    %v85 = vpop.f32.mrf.mxu0
    %v86 = vadd.f32 %v54, %v85
    %87 = vdwg.mxu0
    %v88 = vtanh.pop %v83
    %v89 = vtanh.pop %v86
    %90 = vset.pattern.permute.xlu0 21
    %91 = vperm.xlu0 %90, %v43
    %v92 = vpop.permute.xlu0 %91
    %94 = vset.pattern.permute.xlu0 21
    %95 = vperm.xlu0 %94, %v44
    %v96 = vpop.permute.xlu0 %95
    %98 = vrot.lane.b32.xlu0 %v43, 123
    %v99 = vpop.permute.xlu0 %98
    %100 = vrot.lane.b32.xlu0 %v44, 123
    %v101 = vpop.permute.xlu0 %100
    %vm102 = vcmask 130048
    %v103 = vsel %vm102, %v99, 0
    %v105 = vsel %vm102, %v101, 0
    %107 = vmatpush.msra.mxu0 0.0
    %108 = vmatpush.msra.mxu0 0.0
    %109 = vmatpush.msra.mxu0 0.0
    %110 = vmatpush.msra.mxu0 0.0
    %111 = vmatpush.msra.mxu0 0.0
    %112 = vmatpush.msra.mxu0 0.0
    %113 = vmatpush.msra.mxu0 0.0
    %114 = vmatpush.msra.mxu0 0.0
    %115 = vmatpush.msra.mxu0 0.0
    %116 = vmatpush.msra.mxu0 0.0
    %117 = vmatpush.msra.mxu0 0.0
    %118 = vmatpush.msra.mxu0 0.0
    %119 = vmatpush.msra.mxu0 0.0
    %120 = vmatpush.msra.mxu0 0.0
    %121 = vmatpush.msra.mxu0 %v89
    %122 = vmatpush.msra.mxu0 %v88
    %123 = vmatmul.f32.gmra.mxu0 %v103
    %v124 = vpop.f32.mrf.mxu0
    %v125 = vadd.f32 %v92, %v124
    %126 = vmatmul.f32.gmra.mxu0 %v105
    %v127 = vpop.f32.mrf.mxu0
    %v128 = vadd.f32 %v96, %v127
    %129 = vdwg.mxu0
    %v130 = vtanh.pop %v125
    %v131 = vtanh.pop %v128
    %133 = vset.pattern.permute.xlu0 38
    %134 = vperm.xlu0 %133, %v45
    %v135 = vpop.permute.xlu0 %134
    %137 = vrot.lane.b32.xlu0 %v45, 106
    %v138 = vpop.permute.xlu0 %137
    %v139 = vsel %vm102, %v138, 0
    %141 = vmatpush.msra.mxu0 0.0
    %142 = vmatpush.msra.mxu0 0.0
    %143 = vmatpush.msra.mxu0 0.0
    %144 = vmatpush.msra.mxu0 0.0
    %145 = vmatpush.msra.mxu0 0.0
    %146 = vmatpush.msra.mxu0 0.0
    %147 = vmatpush.msra.mxu0 0.0
    %148 = vmatpush.msra.mxu0 0.0
    %149 = vmatpush.msra.mxu0 0.0
    %150 = vmatpush.msra.mxu0 0.0
    %151 = vmatpush.msra.mxu0 0.0
    %152 = vmatpush.msra.mxu0 0.0
    %153 = vmatpush.msra.mxu0 0.0
    %154 = vmatpush.msra.mxu0 0.0
    %155 = vmatpush.msra.mxu0 %v131
    %156 = vmatpush.msra.mxu0 %v130
    %157 = vmatmul.f32.gmra.mxu0 %v139
    %v158 = vpop.f32.mrf.mxu0
    %v159 = vadd.f32 %v135, %v158
    %160 = vdwg.mxu0
    %vm161 = vcmask 59392
    %162 = vst.msk [vmem:[#allocation7] sm:$0x7] %vm161, %v159
    // Predicated region
    $region18: #{tpu_custom_call.1} parent=1 // pred_check
      _
    $region19: #{tpu_custom_call.1} parent=1 // pred_check_branch
      %164 = sbr.rel (0) target = $region21
    $region20: #{tpu_custom_call.1} parent=1 // pred_region
      %166 = vsyncadd [#allocation4], 0
      %s168 = sshll.u32 [#allocation7], 4
      %s169 = int_to_ptr.vmem [resolvable:$true] %s168
      %s170 = sshll.u32 %s2, 4
      %s171 = int_to_ptr.hbm [resolvable:$true] %s170
      %173 = dma.vmem_to_hbm [thread:$0]  %s169, 64, %s171, [#allocation4]
    $region21: #{tpu_custom_call.1} parent=1 // pred_fallthru
      _
    // Predicated region
    $region22: #{tpu_custom_call.1} parent=1 // pred_check
      _
    $region23: #{tpu_custom_call.1} parent=1 // pred_check_branch
      %175 = sbr.rel (0) target = $region25
    $region24: #{tpu_custom_call.1} parent=1 // pred_region
      %177 = dma.done [#allocation4], 64
    $region25: #{tpu_custom_call.1} parent=1 // pred_fallthru
      _
    %178 = vsyncpa [#allocation3], 1
    %179 = vsyncpa [#allocation6], 1
    %180 = vsyncpa [#allocation4], 1

</llo_original>
